<compile_context>
chip_gen: v6e
topology: v6e:2x2x1
jax: 0.10.0
libtpu: 0.0.40
codegen_flags: <defaults>
</compile_context>

<pallas_src>
import functools

import numpy as np
import jax
import jax.numpy as jnp
from jax.experimental import pallas as pl
from jax.experimental.pallas import tpu as pltpu


def _round_up(x, m):
    return ((x + m - 1) // m) * m


# ----------------------------------------------------------------------------
# Kernel 1: Linear (bias=False) matmul + per-tile BN batch-statistic partials
# ----------------------------------------------------------------------------
def _fc_stats_kernel(x_ref, w_ref, y_ref, stat_ref):
    # bf16 inputs (MXU-native), f32 accumulation.
    y = jnp.dot(x_ref[...], w_ref[...], preferred_element_type=jnp.float32)
    y_ref[...] = y
    # Per-tile partial sums (reduced in XLA).  No resident accumulator -> the whole
    # row-tile grid axis can be "parallel" (v7x megacore; harmless on v5e/v6e).
    s1 = jnp.sum(y, axis=0, keepdims=True)
    s2 = jnp.sum(y * y, axis=0, keepdims=True)
    row = jax.lax.broadcasted_iota(jnp.int32, stat_ref.shape, 0)
    stat_ref[...] = jnp.where(row == 0, s1, jnp.where(row == 1, s2, 0.0))


def fc_with_batch_stats(x_rows, w, gamma, beta, n_true, eps, tile_m=1024):
    """y = x_rows @ w plus BN affine scale/shift from training-mode batch statistics.

    x_rows is feat already permuted into pooled tile order; its padding rows are exact
    zeros, so they contribute nothing to the channel sums and dividing by the true point
    count n_true gives exact statistics.  Cin/Cout padded to multiples of 128.
    """
    R, Cin = x_rows.shape
    Cout = w.shape[1]
    cin_p = _round_up(Cin, 128)
    cout_p = _round_up(Cout, 128)
    tile_m = min(tile_m, _round_up(R, 128))
    r_pad = _round_up(R, tile_m)
    n_tiles = r_pad // tile_m

    x = jnp.pad(x_rows.astype(jnp.bfloat16), ((0, r_pad - R), (0, cin_p - Cin)))
    wb = jnp.pad(w, ((0, cin_p - Cin), (0, cout_p - Cout))).astype(jnp.bfloat16)

    y, stats = pl.pallas_call(
        _fc_stats_kernel,
        out_shape=(jax.ShapeDtypeStruct((r_pad, cout_p), jnp.float32),
                   jax.ShapeDtypeStruct((n_tiles * 8, cout_p), jnp.float32)),
        grid_spec=pltpu.PrefetchScalarGridSpec(
            num_scalar_prefetch=0,
            grid=(n_tiles,),
            in_specs=[pl.BlockSpec((tile_m, cin_p), lambda i: (i, 0)),
                      pl.BlockSpec((cin_p, cout_p), lambda i: (0, 0))],
            out_specs=[pl.BlockSpec((tile_m, cout_p), lambda i: (i, 0)),
                       pl.BlockSpec((8, cout_p), lambda i: (i, 0))]),
        compiler_params=pltpu.CompilerParams(
            dimension_semantics=("parallel",),
            # ~1.6 MiB/step at tile_m=1024, Cpad=128: explicit cap keeps headroom on
            # v7x's 64 MiB physical VMEM and is well inside v5e/v6e defaults.
            vmem_limit_bytes=32 * 1024 * 1024),
    )(x, wb)

    stats = stats.reshape(n_tiles, 8, cout_p)
    s1 = jnp.sum(stats[:, 0, :], axis=0)
    s2 = jnp.sum(stats[:, 1, :], axis=0)
    mean = s1 / n_true
    # TODO(synk): E[y^2]-E[y]^2 can cancel for huge-mean activations; switch to a
    # Welford/two-pass variance if BN tolerances tighten.
    var = jnp.maximum(s2 / n_true - mean * mean, 0.0)      # biased (training-mode BN)
    inv_std = jax.lax.rsqrt(var + eps)
    gamma_p = jnp.pad(gamma.astype(jnp.float32), (0, cout_p - Cout))
    beta_p = jnp.pad(beta.astype(jnp.float32), (0, cout_p - Cout))
    scale = (gamma_p * inv_std).reshape(1, -1)
    shift = (beta_p - mean * gamma_p * inv_std).reshape(1, -1)
    return y, scale, shift, cout_p


# ----------------------------------------------------------------------------
# Kernel 2: windowed voxel-cluster pooling
#   segment MAX over features (BN affine + ReLU fused in)
#   segment SUM over coords + counts via an MXU one-hot matmul
# ----------------------------------------------------------------------------
def _segment_pool_kernel(blk_ref, first_ref, y_ref, side_ref, scale_ref, shift_ref,
                         feat_ref, csum_ref, *, apply_affine_relu):
    # blk_ref (SMEM) is only consumed by the output index_maps.
    c = pl.program_id(0)
    t = pl.program_id(1)

    # First tile of a new output window -> reset the resident window accumulators.
    @pl.when(first_ref[c, t] == 1)
    def _():
        feat_ref[...] = jnp.full(feat_ref.shape, -jnp.inf, feat_ref.dtype)
        csum_ref[...] = jnp.zeros(csum_ref.shape, csum_ref.dtype)

    BM = feat_ref.shape[0]
    TP = y_ref.shape[0]

    sb = side_ref[...]                               # (TP, 8): [x, y, z, 1, lcid, 0, 0, 0]
    lcid = sb[:, 4:5].astype(jnp.int32)              # (TP, 1) window-local id; -1 = pad

    y = y_ref[...]                                   # (TP, Cpad) f32
    if apply_affine_relu:
        # BatchNorm affine (precomputed scale/shift) + ReLU fused here -> no standalone
        # normalize pass / extra HBM round-trip of y.
        y = jnp.maximum(y * scale_ref[...] + shift_ref[...], 0.0)

    # Coord segment-sum + counts on the (otherwise idle) MXU:
    #   csum += onehot(TP,BM)^T @ sb  ->  lanes [sum_x, sum_y, sum_z, count, ...].
    # Padding points carry lcid == -1, so their one-hot row is all zeros.
    wid = jax.lax.broadcasted_iota(jnp.int32, (TP, BM), 1)
    onehot_t = (lcid == wid).astype(jnp.float32)     # (TP, BM)
    csum_ref[...] += jax.lax.dot_general(
        onehot_t, sb, (((0,), (0,)), ((), ())), preferred_element_type=jnp.float32)

    # Windowed segment max, one output row at a time: the live set is a single masked
    # (TP, Cpad) tile -- no (BM, TP, C) slab, no vreg spill.
    def row_body(w, carry):
        m = lcid == w                                # (TP, 1)
        contrib = jnp.max(jnp.where(m, y, -jnp.inf), axis=0, keepdims=True)  # (1, Cpad)
        feat_ref[pl.ds(w, 1), :] = jnp.maximum(feat_ref[pl.ds(w, 1), :], contrib)
        return carry

    jax.lax.fori_loop(0, BM, row_body, 0)


def segment_pool(y_rows, side_rows, blk_tab, first_tab, n_blocks, BM, TP, cpad,
                 scale, shift, apply_affine_relu, ncores, T_pad):
    kernel = functools.partial(_segment_pool_kernel,
                               apply_affine_relu=apply_affine_relu)
    return pl.pallas_call(
        kernel,
        out_shape=(jax.ShapeDtypeStruct((n_blocks * BM, cpad), jnp.float32),
                   jax.ShapeDtypeStruct((n_blocks * BM, 8), jnp.float32)),
        grid_spec=pltpu.PrefetchScalarGridSpec(
            num_scalar_prefetch=2,                    # blk_tab, first_tab -> SMEM
            grid=(ncores, T_pad),
            in_specs=[pl.BlockSpec((TP, cpad),
                                   lambda c, t, blk, first: (c * T_pad + t, 0)),
                      pl.BlockSpec((TP, 8),
                                   lambda c, t, blk, first: (c * T_pad + t, 0)),
                      pl.BlockSpec((1, cpad), lambda c, t, blk, first: (0, 0)),
                      pl.BlockSpec((1, cpad), lambda c, t, blk, first: (0, 0))],
            out_specs=[pl.BlockSpec((BM, cpad), lambda c, t, blk, first: (blk[c, t], 0)),
                       pl.BlockSpec((BM, 8), lambda c, t, blk, first: (blk[c, t], 0))]),
        compiler_params=pltpu.CompilerParams(
            dimension_semantics=("parallel", "arbitrary"),
            vmem_limit_bytes=32 * 1024 * 1024),
    )(blk_tab, first_tab, y_rows, side_rows, scale, shift)


# ----------------------------------------------------------------------------
# Host-side bookkeeping (numpy): window/tile tables + 2-core split
# ----------------------------------------------------------------------------
def _build_pool_tiling(cluster_sorted, idx_ptr, M, BM, TP, ncores):
    """Chunk the cluster-sorted point stream so every TP-point tile feeds exactly one
    BM-cluster output window; split window-contiguously across `ncores` cores."""
    n_blocks = -(-M // BM)
    if n_blocks < 2 or ncores < 2:
        ncores = 1
    c0 = np.arange(n_blocks) * BM
    c1 = np.minimum(c0 + BM, M)
    p0 = idx_ptr[c0]
    p1 = idx_ptr[c1]
    nt = np.maximum(-(-(p1 - p0) // TP), 1)                 # tiles per window (>=1)
    csum_t = np.cumsum(nt)
    total_tiles = int(csum_t[-1])

    bounds = [0]
    for c in range(1, ncores):
        b = int(np.searchsorted(csum_t, total_tiles * c / ncores, side="left")) + 1
        b = min(max(b, bounds[-1] + 1), n_blocks - (ncores - c))
        bounds.append(b)
    bounds.append(n_blocks)

    per_core = []
    for c in range(ncores):
        wlo, whi = bounds[c], bounds[c + 1]
        nts = nt[wlo:whi]
        blk = np.repeat(np.arange(wlo, whi), nts)
        tile_in_win = np.arange(len(blk)) - np.repeat(np.cumsum(nts) - nts, nts)
        first = (tile_in_win == 0).astype(np.int32)
        srow = p0[blk] + tile_in_win * TP
        per_core.append((blk, first, srow))

    T_pad = max(len(pc[0]) for pc in per_core)
    blk_tab = np.zeros((ncores, T_pad), np.int32)
    first_tab = np.zeros((ncores, T_pad), np.int32)
    rows = np.full((ncores, T_pad, TP), -1, np.int64)       # -1 marks padding points
    lcid = np.full((ncores, T_pad, TP), -1, np.int64)
    for c, (blk, first, srow) in enumerate(per_core):
        tr = len(blk)
        blk_tab[c, :tr] = blk
        blk_tab[c, tr:] = blk[-1]          # pad tiles revisit this core's last window
        first_tab[c, :tr] = first
        r = srow[:, None] + np.arange(TP)[None, :]
        valid = r < p1[blk][:, None]
        rows[c, :tr] = np.where(valid, r, -1)
        lcid[c, :tr] = np.where(valid, cluster_sorted[np.where(valid, r, 0)]
                                - blk[:, None] * BM, -1)
    return blk_tab, first_tab, rows, lcid, n_blocks, ncores, T_pad


# ----------------------------------------------------------------------------
# Forward pass
# ----------------------------------------------------------------------------
def voxel_pooling_forward(coord, feat, offset, params, grid_size,
                          skip_fc=False, eps=1e-5, tile_p=128, block_m=16,
                          fc_tile_m=1024, ncores=2):
    # ---- host glue: one device->host pull, everything dynamic-shaped in numpy -------
    coord_np, offset_np = jax.device_get((coord, offset))
    coord_np = np.asarray(coord_np, np.float32)
    offset_np = np.asarray(offset_np, np.int64)
    N = coord_np.shape[0]
    B = offset_np.shape[0]
    seg_starts = np.concatenate([[0], offset_np[:-1]]).astype(np.int64)
    batch_np = np.repeat(np.arange(B), np.diff(np.concatenate([[0], offset_np])))

    # per-batch min corner (segment_csr reduce='min'), voxel hash, unique, stable sort
    start_min = np.minimum.reduceat(coord_np, seg_starts, axis=0)
    v = np.floor((coord_np - start_min[batch_np]) / grid_size).astype(np.int64)
    nx, ny, nz = (v.max(axis=0) + 1)
    key = ((batch_np * nz + v[:, 2]) * ny + v[:, 1]) * nx + v[:, 0]   # batch-major key
    _, cluster_np, counts_np = np.unique(key, return_inverse=True, return_counts=True)
    M = int(counts_np.shape[0])
    sorted_idx_np = np.argsort(cluster_np, kind="stable")
    idx_ptr_np = np.concatenate([[0], np.cumsum(counts_np)]).astype(np.int64)

    # ---- windowed tile tables (BM clusters per output window, TP points per tile) ---
    BM = max(8, _round_up(min(M, block_m), 8))
    TP = tile_p
    blk_tab, first_tab, rows, lcid, n_blocks, ncores, T_pad = _build_pool_tiling(
        cluster_np[sorted_idx_np], idx_ptr_np, M, BM, TP, ncores)

    rows_flat = rows.reshape(-1)
    # padding rows point at an appended all-zero row N (keeps the fused BN sums exact)
    gat = np.where(rows_flat >= 0,
                   sorted_idx_np[np.maximum(rows_flat, 0)], N).astype(np.int32)
    total_rows = gat.shape[0]

    # coalesced per-point sideband slab: [x, y, z, 1, local_cluster_id, 0, 0, 0]
    coord_ext = np.concatenate([coord_np, np.zeros((1, 3), np.float32)], axis=0)
    side = np.zeros((total_rows, 8), np.float32)
    side[:, 0:3] = coord_ext[gat]
    side[:, 3] = (gat < N).astype(np.float32)
    side[:, 4] = lcid.reshape(-1).astype(np.float32)
    side_dev = jnp.asarray(side)

    # permute the *narrow* feat into pooled tile order BEFORE the FC kernel, so the wide
    # y never takes a gather round-trip through HBM.
    Cin = int(feat.shape[1])
    feat_ext = jnp.concatenate([feat, jnp.zeros((1, Cin), feat.dtype)], axis=0)
    feat_rows = feat_ext[jnp.asarray(gat)]

    if not skip_fc:
        y_rows, scale, shift, cpad = fc_with_batch_stats(
            feat_rows, params["w"], params["gamma"], params["beta"],
            jnp.float32(N), eps, tile_m=fc_tile_m)
        fuse = True
        Cout = int(params["w"].shape[1])
    else:
        cpad = _round_up(Cin, 128)
        y_rows = jnp.pad(feat_rows.astype(jnp.float32), ((0, 0), (0, cpad - Cin)))
        scale = jnp.ones((1, cpad), jnp.float32)
        shift = jnp.zeros((1, cpad), jnp.float32)
        fuse = False
        Cout = Cin

    pooled_feat_pad, pooled_side = segment_pool(
        y_rows, side_dev, jnp.asarray(blk_tab), jnp.asarray(first_tab),
        n_blocks, BM, TP, cpad, scale, shift, fuse, ncores, T_pad)

    # padded cluster rows (>= M) hold -inf / 0 and are sliced away here.
    pooled_feat = pooled_feat_pad[:M, :Cout]
    pooled_coord = pooled_side[:M, 0:3] / pooled_side[:M, 3:4]   # MXU counts in lane 3

    batch_out = batch_np[idx_ptr_np[:-1]]
    offset_out = jnp.asarray(np.cumsum(np.bincount(batch_out, minlength=B)), jnp.int32)

    extras = {"cluster": jnp.asarray(cluster_np.astype(np.int32)),
              "indices": jnp.asarray(sorted_idx_np.astype(np.int32)),
              "idx_ptr": jnp.asarray(idx_ptr_np.astype(np.int32))}
    # TODO(synk): generic **point_attributes segment reductions omitted (none in demo).
    return [pooled_coord, pooled_feat, offset_out], extras


# ----------------------------------------------------------------------------
if __name__ == "__main__":
    key = jax.random.PRNGKey(0)
    k1, k2, k3 = jax.random.split(key, 3)

    B, N, Cin, Cout = 2, 64, 16, 32
    grid_size = 0.25

    coord = jax.random.uniform(k1, (N, 3), jnp.float32)
    feat = jax.random.normal(k2, (N, Cin), jnp.float32)
    offset = jnp.array([N // 2, N], dtype=jnp.int32)

    params = {
        "w": jax.random.normal(k3, (Cin, Cout), jnp.float32) / np.sqrt(Cin),
        "gamma": jnp.ones((Cout,), jnp.float32),
        "beta": jnp.zeros((Cout,), jnp.float32),
    }

    (pooled_coord, pooled_feat, offset_out), extras = voxel_pooling_forward(
        coord, feat, offset, params, grid_size)
    jax.block_until_ready(pooled_feat)
    jax.block_until_ready(pooled_coord)

    # ---- pure-JAX reference (mirrors the kernel's bf16-in / f32-accum matmul) -------
    y = jnp.dot(feat.astype(jnp.bfloat16), params["w"].astype(jnp.bfloat16),
                preferred_element_type=jnp.float32)
    mu, var = y.mean(0), y.var(0)
    feat_norm = jnp.maximum((y - mu) * jax.lax.rsqrt(var + 1e-5) * params["gamma"]
                            + params["beta"], 0.0)
    cluster = extras["cluster"]
    M = pooled_feat.shape[0]
    ref_pf = jax.ops.segment_max(feat_norm, cluster, num_segments=M)
    cnts = jax.ops.segment_sum(jnp.ones((N,), jnp.float32), cluster, num_segments=M)
    ref_pc = jax.ops.segment_sum(coord, cluster, num_segments=M) / cnts[:, None]

    assert np.allclose(np.asarray(pooled_feat), np.asarray(ref_pf), atol=2e-3, rtol=2e-3)
    assert np.allclose(np.asarray(pooled_coord), np.asarray(ref_pc), atol=2e-3, rtol=2e-3)
    assert int(offset_out[-1]) == M

    print("KERNEL_OK")
</pallas_src>

<mosaic_0001>
module attributes {stable_mosaic.version = 11 : i64} {
  func.func @_fc_stats_kernel(%arg0: i32, %arg1: memref<512x128xbf16, #tpu.memory_space<vmem>>, %arg2: memref<128x128xbf16, #tpu.memory_space<vmem>>, %arg3: memref<512x128xf32, #tpu.memory_space<vmem>>, %arg4: memref<8x128xf32, #tpu.memory_space<vmem>>) attributes {dimension_semantics = [#tpu.dimension_semantics<parallel>], iteration_bounds = array<i64: 1>, scalar_prefetch = 0 : i64, scratch_operands = 0 : i64, tpu.core_type = #tpu.core_type<tc>, window_params = [{transform_indices = @transform_0, window_bounds = array<i64: 512, 128>}, {pipeline_mode = #tpu.pipeline_mode<synchronous>, transform_indices = @transform_1, window_bounds = array<i64: 128, 128>}, {transform_indices = @transform_2, window_bounds = array<i64: 512, 128>}, {transform_indices = @transform_3, window_bounds = array<i64: 8, 128>}]} {
    %c0 = arith.constant 0 : index
    %c0_0 = arith.constant 0 : index
    %0 = vector.load %arg1[%c0, %c0_0] : memref<512x128xbf16, #tpu.memory_space<vmem>>, vector<512x128xbf16>
    %c0_1 = arith.constant 0 : index
    %c0_2 = arith.constant 0 : index
    %1 = vector.load %arg2[%c0_1, %c0_2] : memref<128x128xbf16, #tpu.memory_space<vmem>>, vector<128x128xbf16>
    %cst = arith.constant dense<0.000000e+00> : vector<512x128xf32>
    %2 = tpu.matmul %0, %1, %cst {dimension_numbers = #tpu.dot_dimension_numbers<[1], [0], [0], [1], [0, 0, 1, 1], [], []>} : vector<512x128xbf16>, vector<128x128xbf16>, vector<512x128xf32> -> vector<512x128xf32>
    %c0_3 = arith.constant 0 : index
    %c0_4 = arith.constant 0 : index
    %3 = vector.load %arg3[%c0_3, %c0_4] : memref<512x128xf32, #tpu.memory_space<vmem>>, vector<512x128xf32>
    tpu.vector_store %arg3[%c0_3, %c0_4], %2 {strides = array<i32>} : memref<512x128xf32, #tpu.memory_space<vmem>>, vector<512x128xf32>,
    %cst_5 = arith.constant dense<0.000000e+00> : vector<128xf32>
    %4 = vector.multi_reduction <add>, %2, %cst_5 [0] : vector<512x128xf32> to vector<128xf32>
    %5 = vector.shape_cast %4 : vector<128xf32> to vector<1x128xf32>
    %6 = arith.mulf %2, %2 : vector<512x128xf32>
    %cst_6 = arith.constant dense<0.000000e+00> : vector<128xf32>
    %7 = vector.multi_reduction <add>, %6, %cst_6 [0] : vector<512x128xf32> to vector<128xf32>
    %8 = vector.shape_cast %7 : vector<128xf32> to vector<1x128xf32>
    %9 = tpu.iota {dimensions = array<i32: 0>} : vector<8x128xi32>
    %c0_i32 = arith.constant 0 : i32
    %10 = vector.broadcast %c0_i32 : i32 to vector<8x128xi32>
    %11 = arith.cmpi eq, %9, %10 : vector<8x128xi32>
    %c1_i32 = arith.constant 1 : i32
    %12 = vector.broadcast %c1_i32 : i32 to vector<8x128xi32>
    %13 = arith.cmpi eq, %9, %12 : vector<8x128xi32>
    %cst_7 = arith.constant 0.000000e+00 : f32
    %14 = vector.shape_cast %8 : vector<1x128xf32> to vector<1x128xf32>
    %15 = vector.broadcast %14 : vector<1x128xf32> to vector<8x128xf32>
    %16 = vector.broadcast %cst_7 : f32 to vector<8x128xf32>
    %17 = arith.select %13, %15, %16 : vector<8x128xi1>, vector<8x128xf32>
    %18 = vector.shape_cast %5 : vector<1x128xf32> to vector<1x128xf32>
    %19 = vector.broadcast %18 : vector<1x128xf32> to vector<8x128xf32>
    %20 = arith.select %11, %19, %17 : vector<8x128xi1>, vector<8x128xf32>
    %c0_8 = arith.constant 0 : index
    %c0_9 = arith.constant 0 : index
    %21 = vector.load %arg4[%c0_8, %c0_9] : memref<8x128xf32, #tpu.memory_space<vmem>>, vector<8x128xf32>
    tpu.vector_store %arg4[%c0_8, %c0_9], %20 {strides = array<i32>} : memref<8x128xf32, #tpu.memory_space<vmem>>, vector<8x128xf32>,
    return
  }
  func.func @transform_0(%arg0: i32) -> (i32, i32) {
    %c0_i32 = arith.constant 0 : i32
    %c0_i32_0 = arith.constant 0 : i32
    return %arg0, %c0_i32 : i32, i32
  }
  func.func @transform_1(%arg0: i32) -> (i32, i32) {
    %c0_i32 = arith.constant 0 : i32
    %c0_i32_0 = arith.constant 0 : i32
    %c0_i32_1 = arith.constant 0 : i32
    return %c0_i32, %c0_i32_0 : i32, i32
  }
  func.func @transform_2(%arg0: i32) -> (i32, i32) {
    %c0_i32 = arith.constant 0 : i32
    %c0_i32_0 = arith.constant 0 : i32
    return %arg0, %c0_i32 : i32, i32
  }
  func.func @transform_3(%arg0: i32) -> (i32, i32) {
    %c0_i32 = arith.constant 0 : i32
    %c0_i32_0 = arith.constant 0 : i32
    return %arg0, %c0_i32 : i32, i32
  }
}

</mosaic_0001>

<llo_original>
// kernel: tpu_custom_call.1
$region0: #{tpu_custom_call.1}
  #allocation0 [shape = 'u32[]', space=smem, size = 0x4, offset = 0x4, fixed_abs, tag = 'smem constant byte address 0x4 - core index']
  #allocation1 [shape = 'u32[144,128]{1,0:T(1,128)}', space=vmem, size = 0x12000, scoped, tag = 'internal scratch']
  %s0 = inlined_call_operand.hbm [shape: bf16[512,128], index: 0, kind: input, shape index: {}]
  %s1 = inlined_call_operand.hbm [shape: bf16[128,128], index: 1, kind: input, shape index: {}]
  %s2 = inlined_call_operand.hbm [shape: f32[512,128], index: 2, kind: output, shape index: {0}]
  %s3 = inlined_call_operand.hbm [shape: f32[8,128], index: 3, kind: output, shape index: {1}]
  %4 = xla_tuple %s2, %s3
  %s5 = sld [smem:[#allocation0]]
  $region34: #{tpu_custom_call.1} parent=0
    _
  %s7 = ssub.s32 1, %s5
  %s8 = scalar_select 0, %s7, %s5
  $region1: #{tpu_custom_call.1} parent=0
    #allocation2 [shape = 'u8[131072]{0}', space=vmem, size = 0x20000, scoped, tag = 'input window, operand 0, single buffered']
    #allocation3 [shape = 's32[1]{0}', space=sflag, size = 0x4, scoped, tag = 'scoped memory for tpu_custom_call.1']
    #allocation4 [shape = 's32[1]{0}', space=sflag, size = 0x4, scoped, tag = 'scoped memory for tpu_custom_call.1']
    #allocation5 [shape = 'u8[32768]{0}', space=vmem, size = 0x8000, scoped, tag = 'input window, operand 1, single buffered']
    #allocation6 [shape = 's32[1]{0}', space=sflag, size = 0x4, scoped, tag = 'scoped memory for tpu_custom_call.1']
    #allocation7 [shape = 'u8[262144]{0}', space=vmem, size = 0x40000, scoped, tag = 'output window, operand 0, single buffered']
    #allocation8 [shape = 'u8[4096]{0}', space=vmem, size = 0x1000, scoped, tag = 'output window, operand 1, single buffered']
    #allocation9 [shape = 's32[1]{0}', space=sflag, size = 0x4, scoped, tag = 'scoped memory for tpu_custom_call.1']
    %9 = vsyncpa [#allocation3], 0
    %10 = vsyncpa [#allocation6], 0
    %11 = vsyncpa [#allocation4], 0
    %12 = vsyncpa [#allocation9], 0
    // Predicated region
    $region2: #{tpu_custom_call.1} parent=1 // pred_check
      _
    $region3: #{tpu_custom_call.1} parent=1 // pred_check_branch
      %14 = sbr.rel (0) target = $region5
    $region4: #{tpu_custom_call.1} parent=1 // pred_region
      %s16 = ssub.s32 4096, 4096
      %17 = vsyncadd [#allocation3], %s16
      %s18 = sshll.u32 [#allocation2], 4
      %s19 = int_to_ptr.vmem [resolvable:$true] %s18
      %24 = dma.hbm_to_vmem [thread:$0]  %s0, 4096, %s19, [#allocation3], 64, 64, 4
    $region5: #{tpu_custom_call.1} parent=1 // pred_fallthru
      _
    // Predicated region
    $region6: #{tpu_custom_call.1} parent=1 // pred_check
      _
    $region7: #{tpu_custom_call.1} parent=1 // pred_check_branch
      %26 = sbr.rel (0) target = $region9
    $region8: #{tpu_custom_call.1} parent=1 // pred_region
      %s28 = ssub.s32 1024, 1024
      %29 = vsyncadd [#allocation6], %s28
      %s30 = sshll.u32 [#allocation5], 4
      %s31 = int_to_ptr.vmem [resolvable:$true] %s30
      %36 = dma.hbm_to_vmem [thread:$0]  %s1, 1024, %s31, [#allocation6], 64, 64, 4
    $region9: #{tpu_custom_call.1} parent=1 // pred_fallthru
      _
    // Predicated region
    $region10: #{tpu_custom_call.1} parent=1 // pred_check
      _
    $region11: #{tpu_custom_call.1} parent=1 // pred_check_branch
      %38 = sbr.rel (0) target = $region13
    $region12: #{tpu_custom_call.1} parent=1 // pred_region
      %39 = dma.done [#allocation3], 4096
    $region13: #{tpu_custom_call.1} parent=1 // pred_fallthru
      _
    // Predicated region
    $region14: #{tpu_custom_call.1} parent=1 // pred_check
      _
    $region15: #{tpu_custom_call.1} parent=1 // pred_check_branch
      %41 = sbr.rel (0) target = $region17
    $region16: #{tpu_custom_call.1} parent=1 // pred_region
      %42 = dma.done [#allocation6], 1024
    $region17: #{tpu_custom_call.1} parent=1 // pred_fallthru
      _
    %v44 = vld [vmem:[#allocation2] sm:$0xf]
    %v45 = vld [vmem:[#allocation2 + $0x4] sm:$0xf]
    %v46 = vld [vmem:[#allocation2 + $0x8] sm:$0xf]
    %v47 = vld [vmem:[#allocation2 + $0xc] sm:$0xf]
    %v48 = vld [vmem:[#allocation2 + $0x10] sm:$0xf]
    %v49 = vld [vmem:[#allocation2 + $0x14] sm:$0xf]
    %v50 = vld [vmem:[#allocation2 + $0x18] sm:$0xf]
    %v51 = vld [vmem:[#allocation2 + $0x1c] sm:$0xf]
    %v52 = vld [vmem:[#allocation2 + $0x20] sm:$0xf]
    %v53 = vld [vmem:[#allocation2 + $0x24] sm:$0xf]
    %v54 = vld [vmem:[#allocation2 + $0x28] sm:$0xf]
    %v55 = vld [vmem:[#allocation2 + $0x2c] sm:$0xf]
    %v56 = vld [vmem:[#allocation2 + $0x30] sm:$0xf]
    %v57 = vld [vmem:[#allocation2 + $0x34] sm:$0xf]
    %v58 = vld [vmem:[#allocation2 + $0x38] sm:$0xf]
    %v59 = vld [vmem:[#allocation2 + $0x3c] sm:$0xf]
    %v60 = vld [vmem:[#allocation2 + $0x40] sm:$0xf]
    %v61 = vld [vmem:[#allocation2 + $0x44] sm:$0xf]
    %v62 = vld [vmem:[#allocation2 + $0x48] sm:$0xf]
    %v63 = vld [vmem:[#allocation2 + $0x4c] sm:$0xf]
    %v64 = vld [vmem:[#allocation2 + $0x50] sm:$0xf]
    %v65 = vld [vmem:[#allocation2 + $0x54] sm:$0xf]
    %v66 = vld [vmem:[#allocation2 + $0x58] sm:$0xf]
    %v67 = vld [vmem:[#allocation2 + $0x5c] sm:$0xf]
    %v68 = vld [vmem:[#allocation2 + $0x60] sm:$0xf]
    %v69 = vld [vmem:[#allocation2 + $0x64] sm:$0xf]
    %v70 = vld [vmem:[#allocation2 + $0x68] sm:$0xf]
    %v71 = vld [vmem:[#allocation2 + $0x6c] sm:$0xf]
    %v72 = vld [vmem:[#allocation2 + $0x70] sm:$0xf]
    %v73 = vld [vmem:[#allocation2 + $0x74] sm:$0xf]
    %v74 = vld [vmem:[#allocation2 + $0x78] sm:$0xf]
    %v75 = vld [vmem:[#allocation2 + $0x7c] sm:$0xf]
    %v76 = vld [vmem:[#allocation2 + $0x80] sm:$0xf]
    %v77 = vld [vmem:[#allocation2 + $0x84] sm:$0xf]
    %v78 = vld [vmem:[#allocation2 + $0x88] sm:$0xf]
    %v79 = vld [vmem:[#allocation2 + $0x8c] sm:$0xf]
    %v80 = vld [vmem:[#allocation2 + $0x90] sm:$0xf]
    %v81 = vld [vmem:[#allocation2 + $0x94] sm:$0xf]
    %v82 = vld [vmem:[#allocation2 + $0x98] sm:$0xf]
    %v83 = vld [vmem:[#allocation2 + $0x9c] sm:$0xf]
    %v84 = vld [vmem:[#allocation2 + $0xa0] sm:$0xf]
    %v85 = vld [vmem:[#allocation2 + $0xa4] sm:$0xf]
    %v86 = vld [vmem:[#allocation2 + $0xa8] sm:$0xf]
    %v87 = vld [vmem:[#allocation2 + $0xac] sm:$0xf]
    %v88 = vld [vmem:[#allocation2 + $0xb0] sm:$0xf]
    %v89 = vld [vmem:[#allocation2 + $0xb4] sm:$0xf]
    %v90 = vld [vmem:[#allocation2 + $0xb8] sm:$0xf]
    %v91 = vld [vmem:[#allocation2 + $0xbc] sm:$0xf]
    %v92 = vld [vmem:[#allocation2 + $0xc0] sm:$0xf]
    %v93 = vld [vmem:[#allocation2 + $0xc4] sm:$0xf]
    %v94 = vld [vmem:[#allocation2 + $0xc8] sm:$0xf]
    %v95 = vld [vmem:[#allocation2 + $0xcc] sm:$0xf]
    %v96 = vld [vmem:[#allocation2 + $0xd0] sm:$0xf]
    %v97 = vld [vmem:[#allocation2 + $0xd4] sm:$0xf]
    %v98 = vld [vmem:[#allocation2 + $0xd8] sm:$0xf]
    %v99 = vld [vmem:[#allocation2 + $0xdc] sm:$0xf]
    %v100 = vld [vmem:[#allocation2 + $0xe0] sm:$0xf]
    %v101 = vld [vmem:[#allocation2 + $0xe4] sm:$0xf]
    %v102 = vld [vmem:[#allocation2 + $0xe8] sm:$0xf]
    %v103 = vld [vmem:[#allocation2 + $0xec] sm:$0xf]
    %v104 = vld [vmem:[#allocation2 + $0xf0] sm:$0xf]
    %v105 = vld [vmem:[#allocation2 + $0xf4] sm:$0xf]
    %v106 = vld [vmem:[#allocation2 + $0xf8] sm:$0xf]
    %v107 = vld [vmem:[#allocation2 + $0xfc] sm:$0xf]
    %v108 = vld [vmem:[#allocation5] sm:$0xf]
    %v109 = vld [vmem:[#allocation5 + $0x4] sm:$0xf]
    %v110 = vld [vmem:[#allocation5 + $0x8] sm:$0xf]
    %v111 = vld [vmem:[#allocation5 + $0xc] sm:$0xf]
    %v112 = vld [vmem:[#allocation5 + $0x10] sm:$0xf]
    %v113 = vld [vmem:[#allocation5 + $0x14] sm:$0xf]
    %v114 = vld [vmem:[#allocation5 + $0x18] sm:$0xf]
    %v115 = vld [vmem:[#allocation5 + $0x1c] sm:$0xf]
    %v116 = vld [vmem:[#allocation5 + $0x20] sm:$0xf]
    %v117 = vld [vmem:[#allocation5 + $0x24] sm:$0xf]
    %v118 = vld [vmem:[#allocation5 + $0x28] sm:$0xf]
    %v119 = vld [vmem:[#allocation5 + $0x2c] sm:$0xf]
    %v120 = vld [vmem:[#allocation5 + $0x30] sm:$0xf]
    %v121 = vld [vmem:[#allocation5 + $0x34] sm:$0xf]
    %v122 = vld [vmem:[#allocation5 + $0x38] sm:$0xf]
    %v123 = vld [vmem:[#allocation5 + $0x3c] sm:$0xf]
    %v188 = vunpack.c.l.b16 %v44
    %v189 = vunpack.c.l.b16 %v45
    %v190 = vunpack.c.l.b16 %v46
    %v191 = vunpack.c.l.b16 %v47
    %v192 = vunpack.c.l.b16 %v48
    %v193 = vunpack.c.l.b16 %v49
    %v194 = vunpack.c.l.b16 %v50
    %v195 = vunpack.c.l.b16 %v51
    %v196 = vunpack.c.l.b16 %v52
    %v197 = vunpack.c.l.b16 %v53
    %v198 = vunpack.c.l.b16 %v54
    %v199 = vunpack.c.l.b16 %v55
    %v200 = vunpack.c.l.b16 %v56
    %v201 = vunpack.c.l.b16 %v57
    %v202 = vunpack.c.l.b16 %v58
    %v203 = vunpack.c.l.b16 %v59
    %v204 = vunpack.c.l.b16 %v60
    %v205 = vunpack.c.l.b16 %v61
    %v206 = vunpack.c.l.b16 %v62
    %v207 = vunpack.c.l.b16 %v63
    %v208 = vunpack.c.l.b16 %v64
    %v209 = vunpack.c.l.b16 %v65
    %v210 = vunpack.c.l.b16 %v66
    %v211 = vunpack.c.l.b16 %v67
    %v212 = vunpack.c.l.b16 %v68
    %v213 = vunpack.c.l.b16 %v69
    %v214 = vunpack.c.l.b16 %v70
    %v215 = vunpack.c.l.b16 %v71
    %v216 = vunpack.c.l.b16 %v72
    %v217 = vunpack.c.l.b16 %v73
    %v218 = vunpack.c.l.b16 %v74
    %v219 = vunpack.c.l.b16 %v75
    %v220 = vunpack.c.l.b16 %v76
    %v221 = vunpack.c.l.b16 %v77
    %v222 = vunpack.c.l.b16 %v78
    %v223 = vunpack.c.l.b16 %v79
    %v224 = vunpack.c.l.b16 %v80
    %v225 = vunpack.c.l.b16 %v81
    %v226 = vunpack.c.l.b16 %v82
    %v227 = vunpack.c.l.b16 %v83
    %v228 = vunpack.c.l.b16 %v84
    %v229 = vunpack.c.l.b16 %v85
    %v230 = vunpack.c.l.b16 %v86
    %v231 = vunpack.c.l.b16 %v87
    %v232 = vunpack.c.l.b16 %v88
    %v233 = vunpack.c.l.b16 %v89
    %v234 = vunpack.c.l.b16 %v90
    %v235 = vunpack.c.l.b16 %v91
    %v236 = vunpack.c.l.b16 %v92
    %v237 = vunpack.c.l.b16 %v93
    %v238 = vunpack.c.l.b16 %v94
    %v239 = vunpack.c.l.b16 %v95
    %v240 = vunpack.c.l.b16 %v96
    %v241 = vunpack.c.l.b16 %v97
    %v242 = vunpack.c.l.b16 %v98
    %v243 = vunpack.c.l.b16 %v99
    %v244 = vunpack.c.l.b16 %v100
    %v245 = vunpack.c.l.b16 %v101
    %v246 = vunpack.c.l.b16 %v102
    %v247 = vunpack.c.l.b16 %v103
    %v248 = vunpack.c.l.b16 %v104
    %v249 = vunpack.c.l.b16 %v105
    %v250 = vunpack.c.l.b16 %v106
    %v251 = vunpack.c.l.b16 %v107
    %v252 = vpack.c.b16 %v189, %v188
    %v253 = vpack.c.b16 %v191, %v190
    %v254 = vpack.c.b16 %v193, %v192
    %v255 = vpack.c.b16 %v195, %v194
    %v256 = vpack.c.b16 %v197, %v196
    %v257 = vpack.c.b16 %v199, %v198
    %v258 = vpack.c.b16 %v201, %v200
    %v259 = vpack.c.b16 %v203, %v202
    %v260 = vpack.c.b16 %v205, %v204
    %v261 = vpack.c.b16 %v207, %v206
    %v262 = vpack.c.b16 %v209, %v208
    %v263 = vpack.c.b16 %v211, %v210
    %v264 = vpack.c.b16 %v213, %v212
    %v265 = vpack.c.b16 %v215, %v214
    %v266 = vpack.c.b16 %v217, %v216
    %v267 = vpack.c.b16 %v219, %v218
    %v268 = vpack.c.b16 %v221, %v220
    %v269 = vpack.c.b16 %v223, %v222
    %v270 = vpack.c.b16 %v225, %v224
    %v271 = vpack.c.b16 %v227, %v226
    %v272 = vpack.c.b16 %v229, %v228
    %v273 = vpack.c.b16 %v231, %v230
    %v274 = vpack.c.b16 %v233, %v232
    %v275 = vpack.c.b16 %v235, %v234
    %v276 = vpack.c.b16 %v237, %v236
    %v277 = vpack.c.b16 %v239, %v238
    %v278 = vpack.c.b16 %v241, %v240
    %v279 = vpack.c.b16 %v243, %v242
    %v280 = vpack.c.b16 %v245, %v244
    %v281 = vpack.c.b16 %v247, %v246
    %v282 = vpack.c.b16 %v249, %v248
    %v283 = vpack.c.b16 %v251, %v250
    %v332 = vunpack.c.l.b16 %v108
    %v333 = vunpack.c.l.b16 %v109
    %v334 = vunpack.c.l.b16 %v110
    %v335 = vunpack.c.l.b16 %v111
    %v336 = vunpack.c.l.b16 %v112
    %v337 = vunpack.c.l.b16 %v113
    %v338 = vunpack.c.l.b16 %v114
    %v339 = vunpack.c.l.b16 %v115
    %v340 = vunpack.c.l.b16 %v116
    %v341 = vunpack.c.l.b16 %v117
    %v342 = vunpack.c.l.b16 %v118
    %v343 = vunpack.c.l.b16 %v119
    %v344 = vunpack.c.l.b16 %v120
    %v345 = vunpack.c.l.b16 %v121
    %v346 = vunpack.c.l.b16 %v122
    %v347 = vunpack.c.l.b16 %v123
    %v348 = vpack.c.b16 %v333, %v332
    %v349 = vpack.c.b16 %v335, %v334
    %v350 = vpack.c.b16 %v337, %v336
    %v351 = vpack.c.b16 %v339, %v338
    %v352 = vpack.c.b16 %v341, %v340
    %v353 = vpack.c.b16 %v343, %v342
    %v354 = vpack.c.b16 %v345, %v344
    %v355 = vpack.c.b16 %v347, %v346
    %364 = vmatprep.subr.bf16.mxu0 0
    %365 = vmatpush1.bf16.msra.mxu0 %v355
    %366 = vmatprep.subr.bf16.mxu0 0
    %367 = vmatpush1.bf16.msra.mxu0 %v354
    %368 = vmatprep.subr.bf16.mxu0 0
    %369 = vmatpush1.bf16.msra.mxu0 %v353
    %370 = vmatprep.subr.bf16.mxu0 0
    %371 = vmatpush1.bf16.msra.mxu0 %v352
    %372 = vmatprep.subr.bf16.mxu0 0
    %373 = vmatpush1.bf16.msra.mxu0 %v351
    %374 = vmatprep.subr.bf16.mxu0 0
    %375 = vmatpush1.bf16.msra.mxu0 %v350
    %376 = vmatprep.subr.bf16.mxu0 0
    %377 = vmatpush1.bf16.msra.mxu0 %v349
    %378 = vmatprep.subr.bf16.mxu0 0
    %379 = vmatpush1.bf16.msra.mxu0 %v348
    %380 = vmatprep.subr.bf16.mxu0 0
    %381 = vmatpush2.bf16.msra.mxu0 0
    %382 = vmatprep.subr.bf16.mxu0 0
    %383 = vmatpush2.bf16.msra.mxu0 0
    %384 = vmatprep.subr.bf16.mxu0 0
    %385 = vmatpush2.bf16.msra.mxu0 0
    %386 = vmatprep.subr.bf16.mxu0 0
    %387 = vmatpush2.bf16.msra.mxu0 0
    %388 = vmatprep.subr.bf16.mxu0 0
    %389 = vmatpush2.bf16.msra.mxu0 0
    %390 = vmatprep.subr.bf16.mxu0 0
    %391 = vmatpush2.bf16.msra.mxu0 0
    %392 = vmatprep.subr.bf16.mxu0 0
    %393 = vmatpush2.bf16.msra.mxu0 0
    %394 = vmatprep.subr.bf16.mxu0 0
    %395 = vmatpush2.bf16.msra.mxu0 0
    %396 = vmatprep.mubr.bf16.mxu0 0
    %397 = vmatmul.mubr.bf16.gmra.mxu0 %v252
    %v398 = vpop.f32.mrf.mxu0
    %v399 = vadd.f32 0.0, %v398
    %v400 = vpop.f32.mrf.mxu0
    %v401 = vpop.f32.mrf.mxu0
    %v402 = vadd.f32 0.0, %v401
    %v403 = vpop.f32.mrf.mxu0
    %404 = vmatprep.mubr.bf16.mxu0 0
    %405 = vmatmul.mubr.bf16.gmra.mxu0 %v253
    %v406 = vpop.f32.mrf.mxu0
    %v407 = vadd.f32 0.0, %v406
    %v408 = vpop.f32.mrf.mxu0
    %v409 = vpop.f32.mrf.mxu0
    %v410 = vadd.f32 0.0, %v409
    %v411 = vpop.f32.mrf.mxu0
    %412 = vmatprep.mubr.bf16.mxu0 0
    %413 = vmatmul.mubr.bf16.gmra.mxu0 %v254
    %v414 = vpop.f32.mrf.mxu0
    %v415 = vadd.f32 0.0, %v414
    %v416 = vpop.f32.mrf.mxu0
    %v417 = vpop.f32.mrf.mxu0
    %v418 = vadd.f32 0.0, %v417
    %v419 = vpop.f32.mrf.mxu0
    %420 = vmatprep.mubr.bf16.mxu0 0
    %421 = vmatmul.mubr.bf16.gmra.mxu0 %v255
    %v422 = vpop.f32.mrf.mxu0
    %v423 = vadd.f32 0.0, %v422
    %v424 = vpop.f32.mrf.mxu0
    %v425 = vpop.f32.mrf.mxu0
    %v426 = vadd.f32 0.0, %v425
    %v427 = vpop.f32.mrf.mxu0
    %428 = vmatprep.mubr.bf16.mxu0 0
    %429 = vmatmul.mubr.bf16.gmra.mxu0 %v256
    %v430 = vpop.f32.mrf.mxu0
    %v431 = vadd.f32 0.0, %v430
    %v432 = vpop.f32.mrf.mxu0
    %v433 = vpop.f32.mrf.mxu0
    %v434 = vadd.f32 0.0, %v433
    %v435 = vpop.f32.mrf.mxu0
    %436 = vmatprep.mubr.bf16.mxu0 0
    %437 = vmatmul.mubr.bf16.gmra.mxu0 %v257
    %v438 = vpop.f32.mrf.mxu0
    %v439 = vadd.f32 0.0, %v438
    %v440 = vpop.f32.mrf.mxu0
    %v441 = vpop.f32.mrf.mxu0
    %v442 = vadd.f32 0.0, %v441
    %v443 = vpop.f32.mrf.mxu0
    %444 = vmatprep.mubr.bf16.mxu0 0
    %445 = vmatmul.mubr.bf16.gmra.mxu0 %v258
    %v446 = vpop.f32.mrf.mxu0
    %v447 = vadd.f32 0.0, %v446
    %v448 = vpop.f32.mrf.mxu0
    %v449 = vpop.f32.mrf.mxu0
    %v450 = vadd.f32 0.0, %v449
    %v451 = vpop.f32.mrf.mxu0
    %452 = vmatprep.mubr.bf16.mxu0 0
    %453 = vmatmul.mubr.bf16.gmra.mxu0 %v259
    %v454 = vpop.f32.mrf.mxu0
    %v455 = vadd.f32 0.0, %v454
    %v456 = vpop.f32.mrf.mxu0
    %v457 = vpop.f32.mrf.mxu0
    %v458 = vadd.f32 0.0, %v457
    %v459 = vpop.f32.mrf.mxu0
    %460 = vmatprep.mubr.bf16.mxu0 0
    %461 = vmatmul.mubr.bf16.gmra.mxu0 %v260
    %v462 = vpop.f32.mrf.mxu0
    %v463 = vadd.f32 0.0, %v462
    %v464 = vpop.f32.mrf.mxu0
    %v465 = vpop.f32.mrf.mxu0
    %v466 = vadd.f32 0.0, %v465
    %v467 = vpop.f32.mrf.mxu0
    %468 = vmatprep.mubr.bf16.mxu0 0
    %469 = vmatmul.mubr.bf16.gmra.mxu0 %v261
    %v470 = vpop.f32.mrf.mxu0
    %v471 = vadd.f32 0.0, %v470
    %v472 = vpop.f32.mrf.mxu0
    %v473 = vpop.f32.mrf.mxu0
    %v474 = vadd.f32 0.0, %v473
    %v475 = vpop.f32.mrf.mxu0
    %476 = vmatprep.mubr.bf16.mxu0 0
    %477 = vmatmul.mubr.bf16.gmra.mxu0 %v262
    %v478 = vpop.f32.mrf.mxu0
    %v479 = vadd.f32 0.0, %v478
    %v480 = vpop.f32.mrf.mxu0
    %v481 = vpop.f32.mrf.mxu0
    %v482 = vadd.f32 0.0, %v481
    %v483 = vpop.f32.mrf.mxu0
    %484 = vmatprep.mubr.bf16.mxu0 0
    %485 = vmatmul.mubr.bf16.gmra.mxu0 %v263
    %v486 = vpop.f32.mrf.mxu0
    %v487 = vadd.f32 0.0, %v486
    %v488 = vpop.f32.mrf.mxu0
    %v489 = vpop.f32.mrf.mxu0
    %v490 = vadd.f32 0.0, %v489
    %v491 = vpop.f32.mrf.mxu0
    %492 = vmatprep.mubr.bf16.mxu0 0
    %493 = vmatmul.mubr.bf16.gmra.mxu0 %v264
    %v494 = vpop.f32.mrf.mxu0
    %v495 = vadd.f32 0.0, %v494
    %v496 = vpop.f32.mrf.mxu0
    %v497 = vpop.f32.mrf.mxu0
    %v498 = vadd.f32 0.0, %v497
    %v499 = vpop.f32.mrf.mxu0
    %500 = vmatprep.mubr.bf16.mxu0 0
    %501 = vmatmul.mubr.bf16.gmra.mxu0 %v265
    %v502 = vpop.f32.mrf.mxu0
    %v503 = vadd.f32 0.0, %v502
    %v504 = vpop.f32.mrf.mxu0
    %v505 = vpop.f32.mrf.mxu0
    %v506 = vadd.f32 0.0, %v505
    %v507 = vpop.f32.mrf.mxu0
    %508 = vmatprep.mubr.bf16.mxu0 0
    %509 = vmatmul.mubr.bf16.gmra.mxu0 %v266
    %v510 = vpop.f32.mrf.mxu0
    %v511 = vadd.f32 0.0, %v510
    %v512 = vpop.f32.mrf.mxu0
    %v513 = vpop.f32.mrf.mxu0
    %v514 = vadd.f32 0.0, %v513
    %v515 = vpop.f32.mrf.mxu0
    %516 = vmatprep.mubr.bf16.mxu0 0
    %517 = vmatmul.mubr.bf16.gmra.mxu0 %v267
    %v518 = vpop.f32.mrf.mxu0
    %v519 = vadd.f32 0.0, %v518
    %v520 = vpop.f32.mrf.mxu0
    %v521 = vpop.f32.mrf.mxu0
    %v522 = vadd.f32 0.0, %v521
    %v523 = vpop.f32.mrf.mxu0
    %524 = vmatprep.mubr.bf16.mxu0 0
    %525 = vmatmul.mubr.bf16.gmra.mxu0 %v268
    %v526 = vpop.f32.mrf.mxu0
    %v527 = vadd.f32 0.0, %v526
    %v528 = vpop.f32.mrf.mxu0
    %v529 = vpop.f32.mrf.mxu0
    %v530 = vadd.f32 0.0, %v529
    %v531 = vpop.f32.mrf.mxu0
    %532 = vmatprep.mubr.bf16.mxu0 0
    %533 = vmatmul.mubr.bf16.gmra.mxu0 %v269
    %v534 = vpop.f32.mrf.mxu0
    %v535 = vadd.f32 0.0, %v534
    %v536 = vpop.f32.mrf.mxu0
    %v537 = vpop.f32.mrf.mxu0
    %v538 = vadd.f32 0.0, %v537
    %v539 = vpop.f32.mrf.mxu0
    %540 = vmatprep.mubr.bf16.mxu0 0
    %541 = vmatmul.mubr.bf16.gmra.mxu0 %v270
    %v542 = vpop.f32.mrf.mxu0
    %v543 = vadd.f32 0.0, %v542
    %v544 = vpop.f32.mrf.mxu0
    %v545 = vpop.f32.mrf.mxu0
    %v546 = vadd.f32 0.0, %v545
    %v547 = vpop.f32.mrf.mxu0
    %548 = vmatprep.mubr.bf16.mxu0 0
    %549 = vmatmul.mubr.bf16.gmra.mxu0 %v271
    %v550 = vpop.f32.mrf.mxu0
    %v551 = vadd.f32 0.0, %v550
    %v552 = vpop.f32.mrf.mxu0
    %v553 = vpop.f32.mrf.mxu0
    %v554 = vadd.f32 0.0, %v553
    %v555 = vpop.f32.mrf.mxu0
    %556 = vmatprep.mubr.bf16.mxu0 0
    %557 = vmatmul.mubr.bf16.gmra.mxu0 %v272
    %v558 = vpop.f32.mrf.mxu0
    %v559 = vadd.f32 0.0, %v558
    %v560 = vpop.f32.mrf.mxu0
    %v561 = vpop.f32.mrf.mxu0
    %v562 = vadd.f32 0.0, %v561
    %v563 = vpop.f32.mrf.mxu0
    %564 = vmatprep.mubr.bf16.mxu0 0
    %565 = vmatmul.mubr.bf16.gmra.mxu0 %v273
    %v566 = vpop.f32.mrf.mxu0
    %v567 = vadd.f32 0.0, %v566
    %v568 = vpop.f32.mrf.mxu0
    %v569 = vpop.f32.mrf.mxu0
    %v570 = vadd.f32 0.0, %v569
    %v571 = vpop.f32.mrf.mxu0
    %572 = vmatprep.mubr.bf16.mxu0 0
    %573 = vmatmul.mubr.bf16.gmra.mxu0 %v274
    %v574 = vpop.f32.mrf.mxu0
    %v575 = vadd.f32 0.0, %v574
    %v576 = vpop.f32.mrf.mxu0
    %v577 = vpop.f32.mrf.mxu0
    %v578 = vadd.f32 0.0, %v577
    %v579 = vpop.f32.mrf.mxu0
    %580 = vmatprep.mubr.bf16.mxu0 0
    %581 = vmatmul.mubr.bf16.gmra.mxu0 %v275
    %v582 = vpop.f32.mrf.mxu0
    %v583 = vadd.f32 0.0, %v582
    %v584 = vpop.f32.mrf.mxu0
    %v585 = vpop.f32.mrf.mxu0
    %v586 = vadd.f32 0.0, %v585
    %v587 = vpop.f32.mrf.mxu0
    %588 = vmatprep.mubr.bf16.mxu0 0
    %589 = vmatmul.mubr.bf16.gmra.mxu0 %v276
    %v590 = vpop.f32.mrf.mxu0
    %v591 = vadd.f32 0.0, %v590
    %v592 = vpop.f32.mrf.mxu0
    %v593 = vpop.f32.mrf.mxu0
    %v594 = vadd.f32 0.0, %v593
    %v595 = vpop.f32.mrf.mxu0
    %596 = vmatprep.mubr.bf16.mxu0 0
    %597 = vmatmul.mubr.bf16.gmra.mxu0 %v277
    %v598 = vpop.f32.mrf.mxu0
    %v599 = vadd.f32 0.0, %v598
    %v600 = vpop.f32.mrf.mxu0
    %v601 = vpop.f32.mrf.mxu0
    %v602 = vadd.f32 0.0, %v601
    %v603 = vpop.f32.mrf.mxu0
    %604 = vmatprep.mubr.bf16.mxu0 0
    %605 = vmatmul.mubr.bf16.gmra.mxu0 %v278
    %v606 = vpop.f32.mrf.mxu0
    %v607 = vadd.f32 0.0, %v606
    %v608 = vpop.f32.mrf.mxu0
    %v609 = vpop.f32.mrf.mxu0
    %v610 = vadd.f32 0.0, %v609
    %v611 = vpop.f32.mrf.mxu0
    %612 = vmatprep.mubr.bf16.mxu0 0
    %613 = vmatmul.mubr.bf16.gmra.mxu0 %v279
    %v614 = vpop.f32.mrf.mxu0
    %v615 = vadd.f32 0.0, %v614
    %v616 = vpop.f32.mrf.mxu0
    %v617 = vpop.f32.mrf.mxu0
    %v618 = vadd.f32 0.0, %v617
    %v619 = vpop.f32.mrf.mxu0
    %620 = vmatprep.mubr.bf16.mxu0 0
    %621 = vmatmul.mubr.bf16.gmra.mxu0 %v280
    %v622 = vpop.f32.mrf.mxu0
    %v623 = vadd.f32 0.0, %v622
    %v624 = vpop.f32.mrf.mxu0
    %v625 = vpop.f32.mrf.mxu0
    %v626 = vadd.f32 0.0, %v625
    %v627 = vpop.f32.mrf.mxu0
    %628 = vmatprep.mubr.bf16.mxu0 0
    %629 = vmatmul.mubr.bf16.gmra.mxu0 %v281
    %v630 = vpop.f32.mrf.mxu0
    %v631 = vadd.f32 0.0, %v630
    %v632 = vpop.f32.mrf.mxu0
    %v633 = vpop.f32.mrf.mxu0
    %v634 = vadd.f32 0.0, %v633
    %v635 = vpop.f32.mrf.mxu0
    %636 = vmatprep.mubr.bf16.mxu0 0
    %637 = vmatmul.mubr.bf16.gmra.mxu0 %v282
    %v638 = vpop.f32.mrf.mxu0
    %v639 = vadd.f32 0.0, %v638
    %v640 = vpop.f32.mrf.mxu0
    %v641 = vpop.f32.mrf.mxu0
    %v642 = vadd.f32 0.0, %v641
    %v643 = vpop.f32.mrf.mxu0
    %644 = vmatprep.mubr.bf16.mxu0 0
    %645 = vmatmul.mubr.bf16.gmra.mxu0 %v283
    %v646 = vpop.f32.mrf.mxu0
    %v647 = vadd.f32 0.0, %v646
    %v648 = vpop.f32.mrf.mxu0
    %v649 = vpop.f32.mrf.mxu0
    %v650 = vadd.f32 0.0, %v649
    %v651 = vpop.f32.mrf.mxu0
    %652 = vdwg.mxu0
    %653 = vst [vmem:[#allocation7] sm:$0xff] %v399
    %654 = vst [vmem:[#allocation7 + $0x8] sm:$0xff] %v402
    %655 = vst [vmem:[#allocation7 + $0x10] sm:$0xff] %v407
    %656 = vst [vmem:[#allocation7 + $0x18] sm:$0xff] %v410
    %657 = vst [vmem:[#allocation7 + $0x20] sm:$0xff] %v415
    %658 = vst [vmem:[#allocation7 + $0x28] sm:$0xff] %v418
    %659 = vst [vmem:[#allocation7 + $0x30] sm:$0xff] %v423
    %660 = vst [vmem:[#allocation7 + $0x38] sm:$0xff] %v426
    %661 = vst [vmem:[#allocation7 + $0x40] sm:$0xff] %v431
    %662 = vst [vmem:[#allocation7 + $0x48] sm:$0xff] %v434
    %663 = vst [vmem:[#allocation7 + $0x50] sm:$0xff] %v439
    %664 = vst [vmem:[#allocation7 + $0x58] sm:$0xff] %v442
    %665 = vst [vmem:[#allocation7 + $0x60] sm:$0xff] %v447
    %666 = vst [vmem:[#allocation7 + $0x68] sm:$0xff] %v450
    %667 = vst [vmem:[#allocation7 + $0x70] sm:$0xff] %v455
    %668 = vst [vmem:[#allocation7 + $0x78] sm:$0xff] %v458
    %669 = vst [vmem:[#allocation7 + $0x80] sm:$0xff] %v463
    %670 = vst [vmem:[#allocation7 + $0x88] sm:$0xff] %v466
    %671 = vst [vmem:[#allocation7 + $0x90] sm:$0xff] %v471
    %672 = vst [vmem:[#allocation7 + $0x98] sm:$0xff] %v474
    %673 = vst [vmem:[#allocation7 + $0xa0] sm:$0xff] %v479
    %674 = vst [vmem:[#allocation7 + $0xa8] sm:$0xff] %v482
    %675 = vst [vmem:[#allocation7 + $0xb0] sm:$0xff] %v487
    %676 = vst [vmem:[#allocation7 + $0xb8] sm:$0xff] %v490
    %677 = vst [vmem:[#allocation7 + $0xc0] sm:$0xff] %v495
    %678 = vst [vmem:[#allocation7 + $0xc8] sm:$0xff] %v498
    %679 = vst [vmem:[#allocation7 + $0xd0] sm:$0xff] %v503
    %680 = vst [vmem:[#allocation7 + $0xd8] sm:$0xff] %v506
    %681 = vst [vmem:[#allocation7 + $0xe0] sm:$0xff] %v511
    %682 = vst [vmem:[#allocation7 + $0xe8] sm:$0xff] %v514
    %683 = vst [vmem:[#allocation7 + $0xf0] sm:$0xff] %v519
    %684 = vst [vmem:[#allocation7 + $0xf8] sm:$0xff] %v522
    %685 = vst [vmem:[#allocation7 + $0x100] sm:$0xff] %v527
    %686 = vst [vmem:[#allocation7 + $0x108] sm:$0xff] %v530
    %687 = vst [vmem:[#allocation7 + $0x110] sm:$0xff] %v535
    %688 = vst [vmem:[#allocation7 + $0x118] sm:$0xff] %v538
    %689 = vst [vmem:[#allocation7 + $0x120] sm:$0xff] %v543
    %690 = vst [vmem:[#allocation7 + $0x128] sm:$0xff] %v546
    %691 = vst [vmem:[#allocation7 + $0x130] sm:$0xff] %v551
    %692 = vst [vmem:[#allocation7 + $0x138] sm:$0xff] %v554
    %693 = vst [vmem:[#allocation7 + $0x140] sm:$0xff] %v559
    %694 = vst [vmem:[#allocation7 + $0x148] sm:$0xff] %v562
    %695 = vst [vmem:[#allocation7 + $0x150] sm:$0xff] %v567
    %696 = vst [vmem:[#allocation7 + $0x158] sm:$0xff] %v570
    %697 = vst [vmem:[#allocation7 + $0x160] sm:$0xff] %v575
    %698 = vst [vmem:[#allocation7 + $0x168] sm:$0xff] %v578
    %699 = vst [vmem:[#allocation7 + $0x170] sm:$0xff] %v583
    %700 = vst [vmem:[#allocation7 + $0x178] sm:$0xff] %v586
    %701 = vst [vmem:[#allocation7 + $0x180] sm:$0xff] %v591
    %702 = vst [vmem:[#allocation7 + $0x188] sm:$0xff] %v594
    %703 = vst [vmem:[#allocation7 + $0x190] sm:$0xff] %v599
    %704 = vst [vmem:[#allocation7 + $0x198] sm:$0xff] %v602
    %705 = vst [vmem:[#allocation7 + $0x1a0] sm:$0xff] %v607
    %706 = vst [vmem:[#allocation7 + $0x1a8] sm:$0xff] %v610
    %707 = vst [vmem:[#allocation7 + $0x1b0] sm:$0xff] %v615
    %708 = vst [vmem:[#allocation7 + $0x1b8] sm:$0xff] %v618
    %709 = vst [vmem:[#allocation7 + $0x1c0] sm:$0xff] %v623
    %710 = vst [vmem:[#allocation7 + $0x1c8] sm:$0xff] %v626
    %711 = vst [vmem:[#allocation7 + $0x1d0] sm:$0xff] %v631
    %712 = vst [vmem:[#allocation7 + $0x1d8] sm:$0xff] %v634
    %713 = vst [vmem:[#allocation7 + $0x1e0] sm:$0xff] %v639
    %714 = vst [vmem:[#allocation7 + $0x1e8] sm:$0xff] %v642
    %715 = vst [vmem:[#allocation7 + $0x1f0] sm:$0xff] %v647
    %716 = vst [vmem:[#allocation7 + $0x1f8] sm:$0xff] %v650
    %v717 = vadd.f32 %v399, %v402
    %v718 = vadd.f32 %v717, %v407
    %v719 = vadd.f32 %v718, %v410
    %v720 = vadd.f32 %v719, %v415
    %v721 = vadd.f32 %v720, %v418
    %v722 = vadd.f32 %v721, %v423
    %v723 = vadd.f32 %v722, %v426
    %v724 = vadd.f32 %v723, %v431
    %v725 = vadd.f32 %v724, %v434
    %v726 = vadd.f32 %v725, %v439
    %v727 = vadd.f32 %v726, %v442
    %v728 = vadd.f32 %v727, %v447
    %v729 = vadd.f32 %v728, %v450
    %v730 = vadd.f32 %v729, %v455
    %v731 = vadd.f32 %v730, %v458
    %v732 = vadd.f32 %v731, %v463
    %v733 = vadd.f32 %v732, %v466
    %v734 = vadd.f32 %v733, %v471
    %v735 = vadd.f32 %v734, %v474
    %v736 = vadd.f32 %v735, %v479
    %v737 = vadd.f32 %v736, %v482
    %v738 = vadd.f32 %v737, %v487
    %v739 = vadd.f32 %v738, %v490
    %v740 = vadd.f32 %v739, %v495
    %v741 = vadd.f32 %v740, %v498
    %v742 = vadd.f32 %v741, %v503
    %v743 = vadd.f32 %v742, %v506
    %v744 = vadd.f32 %v743, %v511
    %v745 = vadd.f32 %v744, %v514
    %v746 = vadd.f32 %v745, %v519
    %v747 = vadd.f32 %v746, %v522
    %v748 = vadd.f32 %v747, %v527
    %v749 = vadd.f32 %v748, %v530
    %v750 = vadd.f32 %v749, %v535
    %v751 = vadd.f32 %v750, %v538
    %v752 = vadd.f32 %v751, %v543
    %v753 = vadd.f32 %v752, %v546
    %v754 = vadd.f32 %v753, %v551
    %v755 = vadd.f32 %v754, %v554
    %v756 = vadd.f32 %v755, %v559
    %v757 = vadd.f32 %v756, %v562
    %v758 = vadd.f32 %v757, %v567
    %v759 = vadd.f32 %v758, %v570
    %v760 = vadd.f32 %v759, %v575
    %v761 = vadd.f32 %v760, %v578
    %v762 = vadd.f32 %v761, %v583
    %v763 = vadd.f32 %v762, %v586
    %v764 = vadd.f32 %v763, %v591
    %v765 = vadd.f32 %v764, %v594
    %v766 = vadd.f32 %v765, %v599
    %v767 = vadd.f32 %v766, %v602
    %v768 = vadd.f32 %v767, %v607
    %v769 = vadd.f32 %v768, %v610
    %v770 = vadd.f32 %v769, %v615
    %v771 = vadd.f32 %v770, %v618
    %v772 = vadd.f32 %v771, %v623
    %v773 = vadd.f32 %v772, %v626
    %v774 = vadd.f32 %v773, %v631
    %v775 = vadd.f32 %v774, %v634
    %v776 = vadd.f32 %v775, %v639
    %v777 = vadd.f32 %v776, %v642
    %v778 = vadd.f32 %v777, %v647
    %v779 = vadd.f32 %v778, %v650
    %v780 = vrot.slane %v779, 4
    %v781 = vadd.f32 %v779, %v780
    %v782 = vrot.slane %v781, 2
    %v783 = vadd.f32 %v781, %v782
    %v784 = vrot.slane %v783, 1
    %v785 = vadd.f32 %v783, %v784
    %v786 = vmul.f32 %v399, %v399
    %v787 = vmul.f32 %v402, %v402
    %v788 = vmul.f32 %v407, %v407
    %v789 = vmul.f32 %v410, %v410
    %v790 = vmul.f32 %v415, %v415
    %v791 = vmul.f32 %v418, %v418
    %v792 = vmul.f32 %v423, %v423
    %v793 = vmul.f32 %v426, %v426
    %v794 = vmul.f32 %v431, %v431
    %v795 = vmul.f32 %v434, %v434
    %v796 = vmul.f32 %v439, %v439
    %v797 = vmul.f32 %v442, %v442
    %v798 = vmul.f32 %v447, %v447
    %v799 = vmul.f32 %v450, %v450
    %v800 = vmul.f32 %v455, %v455
    %v801 = vmul.f32 %v458, %v458
    %v802 = vmul.f32 %v463, %v463
    %v803 = vmul.f32 %v466, %v466
    %v804 = vmul.f32 %v471, %v471
    %v805 = vmul.f32 %v474, %v474
    %v806 = vmul.f32 %v479, %v479
    %v807 = vmul.f32 %v482, %v482
    %v808 = vmul.f32 %v487, %v487
    %v809 = vmul.f32 %v490, %v490
    %v810 = vmul.f32 %v495, %v495
    %v811 = vmul.f32 %v498, %v498
    %v812 = vmul.f32 %v503, %v503
    %v813 = vmul.f32 %v506, %v506
    %v814 = vmul.f32 %v511, %v511
    %v815 = vmul.f32 %v514, %v514
    %v816 = vmul.f32 %v519, %v519
    %v817 = vmul.f32 %v522, %v522
    %v818 = vmul.f32 %v527, %v527
    %v819 = vmul.f32 %v530, %v530
    %v820 = vmul.f32 %v535, %v535
    %v821 = vmul.f32 %v538, %v538
    %v822 = vmul.f32 %v543, %v543
    %v823 = vmul.f32 %v546, %v546
    %v824 = vmul.f32 %v551, %v551
    %v825 = vmul.f32 %v554, %v554
    %v826 = vmul.f32 %v559, %v559
    %v827 = vmul.f32 %v562, %v562
    %v828 = vmul.f32 %v567, %v567
    %v829 = vmul.f32 %v570, %v570
    %v830 = vmul.f32 %v575, %v575
    %v831 = vmul.f32 %v578, %v578
    %v832 = vmul.f32 %v583, %v583
    %v833 = vmul.f32 %v586, %v586
    %v834 = vmul.f32 %v591, %v591
    %v835 = vmul.f32 %v594, %v594
    %v836 = vmul.f32 %v599, %v599
    %v837 = vmul.f32 %v602, %v602
    %v838 = vmul.f32 %v607, %v607
    %v839 = vmul.f32 %v610, %v610
    %v840 = vmul.f32 %v615, %v615
    %v841 = vmul.f32 %v618, %v618
    %v842 = vmul.f32 %v623, %v623
    %v843 = vmul.f32 %v626, %v626
    %v844 = vmul.f32 %v631, %v631
    %v845 = vmul.f32 %v634, %v634
    %v846 = vmul.f32 %v639, %v639
    %v847 = vmul.f32 %v642, %v642
    %v848 = vmul.f32 %v647, %v647
    %v849 = vmul.f32 %v650, %v650
    %v850 = vadd.f32 %v786, %v787
    %v851 = vadd.f32 %v850, %v788
    %v852 = vadd.f32 %v851, %v789
    %v853 = vadd.f32 %v852, %v790
    %v854 = vadd.f32 %v853, %v791
    %v855 = vadd.f32 %v854, %v792
    %v856 = vadd.f32 %v855, %v793
    %v857 = vadd.f32 %v856, %v794
    %v858 = vadd.f32 %v857, %v795
    %v859 = vadd.f32 %v858, %v796
    %v860 = vadd.f32 %v859, %v797
    %v861 = vadd.f32 %v860, %v798
    %v862 = vadd.f32 %v861, %v799
    %v863 = vadd.f32 %v862, %v800
    %v864 = vadd.f32 %v863, %v801
    %v865 = vadd.f32 %v864, %v802
    %v866 = vadd.f32 %v865, %v803
    %v867 = vadd.f32 %v866, %v804
    %v868 = vadd.f32 %v867, %v805
    %v869 = vadd.f32 %v868, %v806
    %v870 = vadd.f32 %v869, %v807
    %v871 = vadd.f32 %v870, %v808
    %v872 = vadd.f32 %v871, %v809
    %v873 = vadd.f32 %v872, %v810
    %v874 = vadd.f32 %v873, %v811
    %v875 = vadd.f32 %v874, %v812
    %v876 = vadd.f32 %v875, %v813
    %v877 = vadd.f32 %v876, %v814
    %v878 = vadd.f32 %v877, %v815
    %v879 = vadd.f32 %v878, %v816
    %v880 = vadd.f32 %v879, %v817
    %v881 = vadd.f32 %v880, %v818
    %v882 = vadd.f32 %v881, %v819
    %v883 = vadd.f32 %v882, %v820
    %v884 = vadd.f32 %v883, %v821
    %v885 = vadd.f32 %v884, %v822
    %v886 = vadd.f32 %v885, %v823
    %v887 = vadd.f32 %v886, %v824
    %v888 = vadd.f32 %v887, %v825
    %v889 = vadd.f32 %v888, %v826
    %v890 = vadd.f32 %v889, %v827
    %v891 = vadd.f32 %v890, %v828
    %v892 = vadd.f32 %v891, %v829
    %v893 = vadd.f32 %v892, %v830
    %v894 = vadd.f32 %v893, %v831
    %v895 = vadd.f32 %v894, %v832
    %v896 = vadd.f32 %v895, %v833
    %v897 = vadd.f32 %v896, %v834
    %v898 = vadd.f32 %v897, %v835
    %v899 = vadd.f32 %v898, %v836
    %v900 = vadd.f32 %v899, %v837
    %v901 = vadd.f32 %v900, %v838
    %v902 = vadd.f32 %v901, %v839
    %v903 = vadd.f32 %v902, %v840
    %v904 = vadd.f32 %v903, %v841
    %v905 = vadd.f32 %v904, %v842
    %v906 = vadd.f32 %v905, %v843
    %v907 = vadd.f32 %v906, %v844
    %v908 = vadd.f32 %v907, %v845
    %v909 = vadd.f32 %v908, %v846
    %v910 = vadd.f32 %v909, %v847
    %v911 = vadd.f32 %v910, %v848
    %v912 = vadd.f32 %v911, %v849
    %v913 = vrot.slane %v912, 4
    %v914 = vadd.f32 %v912, %v913
    %v915 = vrot.slane %v914, 2
    %v916 = vadd.f32 %v914, %v915
    %v917 = vrot.slane %v916, 1
    %v918 = vadd.f32 %v916, %v917
    %v919 = vlaneseq
    %v920 = vshrl.u32 %v919, 7
    %vm921 = vcmp.eq.s32.totalorder %v920, 0
    %vm922 = vcmp.eq.s32.totalorder %v920, 1
    %v923 = vsel %vm922, %v918, 0.0
    %v924 = vsel %vm921, %v785, %v923
    %925 = vst [vmem:[#allocation8] sm:$0xff] %v924
    // Predicated region
    $region18: #{tpu_custom_call.1} parent=1 // pred_check
      _
    $region19: #{tpu_custom_call.1} parent=1 // pred_check_branch
      %927 = sbr.rel (0) target = $region21
    $region20: #{tpu_custom_call.1} parent=1 // pred_region
      %s929 = ssub.s32 8192, 8192
      %930 = vsyncadd [#allocation4], %s929
      %s931 = sshll.u32 [#allocation7], 4
      %s932 = int_to_ptr.vmem [resolvable:$true] %s931
      %937 = dma.vmem_to_hbm [thread:$0]  %s932, 8192, %s2, [#allocation4], 128, 128, 8
    $region21: #{tpu_custom_call.1} parent=1 // pred_fallthru
      _
    // Predicated region
    $region22: #{tpu_custom_call.1} parent=1 // pred_check
      _
    $region23: #{tpu_custom_call.1} parent=1 // pred_check_branch
      %939 = sbr.rel (0) target = $region25
    $region24: #{tpu_custom_call.1} parent=1 // pred_region
      %s941 = ssub.s32 128, 128
      %942 = vsyncadd [#allocation9], %s941
      %s944 = sshll.u32 [#allocation8], 4
      %s945 = int_to_ptr.vmem [resolvable:$true] %s944
      %947 = dma.vmem_to_hbm [thread:$0]  %s945, 128, %s3, [#allocation9]
    $region25: #{tpu_custom_call.1} parent=1 // pred_fallthru
      _
    // Predicated region
    $region26: #{tpu_custom_call.1} parent=1 // pred_check
      _
    $region27: #{tpu_custom_call.1} parent=1 // pred_check_branch
      %949 = sbr.rel (0) target = $region29
    $region28: #{tpu_custom_call.1} parent=1 // pred_region
      %950 = dma.done [#allocation4], 8192
    $region29: #{tpu_custom_call.1} parent=1 // pred_fallthru
      _
    // Predicated region
    $region30: #{tpu_custom_call.1} parent=1 // pred_check
      _
    $region31: #{tpu_custom_call.1} parent=1 // pred_check_branch
      %952 = sbr.rel (0) target = $region33
    $region32: #{tpu_custom_call.1} parent=1 // pred_region
      %953 = dma.done [#allocation9], 128
    $region33: #{tpu_custom_call.1} parent=1 // pred_fallthru
      _
    %954 = vsyncpa [#allocation3], 1
    %955 = vsyncpa [#allocation6], 1
    %956 = vsyncpa [#allocation4], 1
    %957 = vsyncpa [#allocation9], 1

</llo_original>
